<compile_context>
chip_gen: v7x
topology: tpu7x:2x2x1
jax: 0.10.0
libtpu: 0.0.40
codegen_flags: <defaults>
</compile_context>

<pallas_src>
import jax
import jax.numpy as jnp
from jax.experimental import pallas as pl
from jax.experimental.pallas import tpu as pltpu

F_IN = 63          # 21 landmarks x 3 coords
MAX_TILE = 16384   # rows per grid step (f32 x tile ~4 MiB, double-buffered)


def mlp_kernel(x_ref,
               w1t_ref, b1_ref,
               w2t_ref, b2_ref,
               w3t_ref, b3_ref,
               w4t_ref, b4_ref,
               o_ref):
    # x_ref: (tb, 63) f32. Go feature-major: (63, tb) bf16 MXU operand.
    # f32 transpose (XLU) then cast (VPU); both slots have slack vs MXU/HBM.
    x_t = x_ref[...].T.astype(jnp.bfloat16)                       # (63, tb)

    # Layer 1: (32, 63) @ (63, tb) -> (32, tb), f32 accumulate.
    h = jnp.dot(w1t_ref[...], x_t, preferred_element_type=jnp.float32)
    h = jnp.maximum(h + b1_ref[...], 0.0)
    # Layer 2: (32, 32) @ (32, tb) -> (32, tb)
    h = jnp.dot(w2t_ref[...], h.astype(jnp.bfloat16),
                preferred_element_type=jnp.float32)
    h = jnp.maximum(h + b2_ref[...], 0.0)
    # Layer 3: (16, 32) @ (32, tb) -> (16, tb)
    h = jnp.dot(w3t_ref[...], h.astype(jnp.bfloat16),
                preferred_element_type=jnp.float32)
    h = jnp.maximum(h + b3_ref[...], 0.0)
    # Layer 4: (3, 16) @ (16, tb) -> (3, tb), logits (lane-dense store).
    h = jnp.dot(w4t_ref[...], h.astype(jnp.bfloat16),
                preferred_element_type=jnp.float32)
    o_ref[...] = (h + b4_ref[...]).astype(o_ref.dtype)


def _round_up(n, m):
    return ((n + m - 1) // m) * m


def _choose_tile(batch):
    """Pick the batch tile.

    - Tiny batches: a single full-extent block (always BlockSpec-legal).
    - Otherwise: 128-lane-aligned tiles, >= 2 grid steps (so v7x can shard the
      "parallel" axis across both TensorCores), capped at MAX_TILE rows.
    """
    if batch <= 256:
        return batch, 1
    tb = min(MAX_TILE, _round_up(pl.cdiv(batch, 2), 128))
    return tb, pl.cdiv(batch, tb)


def torch_nn_forward(x, params):
    """x: (B, 21, 3) or (B, 63) float32. Returns (B, 3) float32 logits."""
    B = x.shape[0]
    x2d = x.reshape(B, -1)                       # (B, 63) -- free view, no copy
    assert x2d.shape[1] == F_IN

    tb, num_steps = _choose_tile(B)

    w1t, b1 = params["w1t"], params["b1"]
    w2t, b2 = params["w2t"], params["b2"]
    w3t, b3 = params["w3t"], params["b3"]
    w4t, b4 = params["w4t"], params["b4"]

    def const_spec(arr):
        # Same block every grid step -> stays VMEM-resident, no re-DMA.
        return pl.BlockSpec(arr.shape, lambda i: (0, 0))

    out_t = pl.pallas_call(
        mlp_kernel,
        out_shape=jax.ShapeDtypeStruct((3, B), jnp.float32),
        grid=(num_steps,),
        in_specs=[
            pl.BlockSpec((tb, F_IN), lambda i: (i, 0)),
            const_spec(w1t), const_spec(b1),
            const_spec(w2t), const_spec(b2),
            const_spec(w3t), const_spec(b3),
            const_spec(w4t), const_spec(b4),
        ],
        out_specs=pl.BlockSpec((3, tb), lambda i: (0, i)),
        compiler_params=pltpu.CompilerParams(
            dimension_semantics=("parallel",),
            vmem_limit_bytes=40 * 1024 * 1024),
    )(x2d, w1t, b1, w2t, b2, w3t, b3, w4t, b4)

    # Tiny (3, B) -> (B, 3) relayout; negligible vs. the x stream.
    return out_t.T


def init_params(key):
    """Torch-Linear-style init. Weights stored transposed (out, in) bf16 --
    torch's own Linear.weight layout -- biases stored (out, 1) f32."""
    dims = [(F_IN, 32), (32, 32), (32, 16), (16, 3)]
    params = {}
    for i, (fan_in, fan_out) in enumerate(dims, start=1):
        key, kw, kb = jax.random.split(key, 3)
        bound = 1.0 / float(jnp.sqrt(fan_in))
        wt = jax.random.uniform(kw, (fan_out, fan_in), jnp.float32, -bound, bound)
        params[f"w{i}t"] = wt.astype(jnp.bfloat16)
        params[f"b{i}"] = jax.random.uniform(
            kb, (fan_out, 1), jnp.float32, -bound, bound)
    return params


if __name__ == "__main__":
    key = jax.random.PRNGKey(0)
    kp, kx = jax.random.split(key)
    params = init_params(kp)

    # 21 hand landmarks x 3 coordinates, small batch of 4.
    x = jax.random.normal(kx, (4, 21, 3), dtype=jnp.float32)

    logits = torch_nn_forward(x, params)
    jax.block_until_ready(logits)

    # Reference in plain JAX with matching bf16-operand / f32-accumulate math.
    def ref(x, p):
        h = x.reshape(x.shape[0], -1).astype(jnp.bfloat16)        # (B, 63)
        h = jnp.maximum(
            jnp.dot(h, p["w1t"].T, preferred_element_type=jnp.float32)
            + p["b1"].T, 0.0)
        h = jnp.maximum(
            jnp.dot(h.astype(jnp.bfloat16), p["w2t"].T,
                    preferred_element_type=jnp.float32) + p["b2"].T, 0.0)
        h = jnp.maximum(
            jnp.dot(h.astype(jnp.bfloat16), p["w3t"].T,
                    preferred_element_type=jnp.float32) + p["b3"].T, 0.0)
        return (jnp.dot(h.astype(jnp.bfloat16), p["w4t"].T,
                        preferred_element_type=jnp.float32) + p["b4"].T)

    expected = ref(x, params)
    assert logits.shape == (4, 3)
    assert jnp.allclose(logits, expected, atol=1e-2, rtol=1e-2)

    print("KERNEL_OK")
</pallas_src>

<mosaic_0001>
module attributes {stable_mosaic.version = 11 : i64} {
  func.func @mlp_kernel(%arg0: i32, %arg1: memref<4x63xf32, #tpu.memory_space<vmem>>, %arg2: memref<32x63xbf16, #tpu.memory_space<vmem>>, %arg3: memref<32x1xf32, #tpu.memory_space<vmem>>, %arg4: memref<32x32xbf16, #tpu.memory_space<vmem>>, %arg5: memref<32x1xf32, #tpu.memory_space<vmem>>, %arg6: memref<16x32xbf16, #tpu.memory_space<vmem>>, %arg7: memref<16x1xf32, #tpu.memory_space<vmem>>, %arg8: memref<3x16xbf16, #tpu.memory_space<vmem>>, %arg9: memref<3x1xf32, #tpu.memory_space<vmem>>, %arg10: memref<3x4xf32, #tpu.memory_space<vmem>>) attributes {dimension_semantics = [#tpu.dimension_semantics<parallel>], iteration_bounds = array<i64: 1>, scalar_prefetch = 0 : i64, scratch_operands = 0 : i64, tpu.core_type = #tpu.core_type<tc>, window_params = [{transform_indices = @transform_0, window_bounds = array<i64: 4, 63>}, {pipeline_mode = #tpu.pipeline_mode<synchronous>, transform_indices = @transform_1, window_bounds = array<i64: 32, 63>}, {pipeline_mode = #tpu.pipeline_mode<synchronous>, transform_indices = @transform_2, window_bounds = array<i64: 32, 1>}, {pipeline_mode = #tpu.pipeline_mode<synchronous>, transform_indices = @transform_3, window_bounds = array<i64: 32, 32>}, {pipeline_mode = #tpu.pipeline_mode<synchronous>, transform_indices = @transform_4, window_bounds = array<i64: 32, 1>}, {pipeline_mode = #tpu.pipeline_mode<synchronous>, transform_indices = @transform_5, window_bounds = array<i64: 16, 32>}, {pipeline_mode = #tpu.pipeline_mode<synchronous>, transform_indices = @transform_6, window_bounds = array<i64: 16, 1>}, {pipeline_mode = #tpu.pipeline_mode<synchronous>, transform_indices = @transform_7, window_bounds = array<i64: 3, 16>}, {pipeline_mode = #tpu.pipeline_mode<synchronous>, transform_indices = @transform_8, window_bounds = array<i64: 3, 1>}, {transform_indices = @transform_9, window_bounds = array<i64: 3, 4>}]} {
    %c0 = arith.constant 0 : index
    %c0_0 = arith.constant 0 : index
    %0 = vector.load %arg1[%c0, %c0_0] : memref<4x63xf32, #tpu.memory_space<vmem>>, vector<4x63xf32>
    %1 = tpu.transpose %0, [1, 0] : vector<4x63xf32> -> vector<63x4xf32>
    %2 = arith.truncf %1 : vector<63x4xf32> to vector<63x4xbf16>
    %c0_1 = arith.constant 0 : index
    %c0_2 = arith.constant 0 : index
    %3 = vector.load %arg2[%c0_1, %c0_2] : memref<32x63xbf16, #tpu.memory_space<vmem>>, vector<32x63xbf16>
    %cst = arith.constant dense<0.000000e+00> : vector<32x4xf32>
    %4 = tpu.matmul %3, %2, %cst {dimension_numbers = #tpu.dot_dimension_numbers<[1], [0], [0], [1], [0, 0, 1, 1], [], []>} : vector<32x63xbf16>, vector<63x4xbf16>, vector<32x4xf32> -> vector<32x4xf32>
    %c0_3 = arith.constant 0 : index
    %c0_4 = arith.constant 0 : index
    %5 = vector.load %arg3[%c0_3, %c0_4] : memref<32x1xf32, #tpu.memory_space<vmem>>, vector<32x1xf32>
    %6 = vector.broadcast %5 : vector<32x1xf32> to vector<32x4xf32>
    %7 = arith.addf %4, %6 : vector<32x4xf32>
    %cst_5 = arith.constant 0.000000e+00 : f32
    %8 = vector.broadcast %cst_5 : f32 to vector<32x4xf32>
    %9 = arith.maximumf %7, %8 : vector<32x4xf32>
    %c0_6 = arith.constant 0 : index
    %c0_7 = arith.constant 0 : index
    %10 = vector.load %arg4[%c0_6, %c0_7] : memref<32x32xbf16, #tpu.memory_space<vmem>>, vector<32x32xbf16>
    %11 = arith.truncf %9 : vector<32x4xf32> to vector<32x4xbf16>
    %cst_8 = arith.constant dense<0.000000e+00> : vector<32x4xf32>
    %12 = tpu.matmul %10, %11, %cst_8 {dimension_numbers = #tpu.dot_dimension_numbers<[1], [0], [0], [1], [0, 0, 1, 1], [], []>} : vector<32x32xbf16>, vector<32x4xbf16>, vector<32x4xf32> -> vector<32x4xf32>
    %c0_9 = arith.constant 0 : index
    %c0_10 = arith.constant 0 : index
    %13 = vector.load %arg5[%c0_9, %c0_10] : memref<32x1xf32, #tpu.memory_space<vmem>>, vector<32x1xf32>
    %14 = vector.broadcast %13 : vector<32x1xf32> to vector<32x4xf32>
    %15 = arith.addf %12, %14 : vector<32x4xf32>
    %cst_11 = arith.constant 0.000000e+00 : f32
    %16 = vector.broadcast %cst_11 : f32 to vector<32x4xf32>
    %17 = arith.maximumf %15, %16 : vector<32x4xf32>
    %c0_12 = arith.constant 0 : index
    %c0_13 = arith.constant 0 : index
    %18 = vector.load %arg6[%c0_12, %c0_13] : memref<16x32xbf16, #tpu.memory_space<vmem>>, vector<16x32xbf16>
    %19 = arith.truncf %17 : vector<32x4xf32> to vector<32x4xbf16>
    %cst_14 = arith.constant dense<0.000000e+00> : vector<16x4xf32>
    %20 = tpu.matmul %18, %19, %cst_14 {dimension_numbers = #tpu.dot_dimension_numbers<[1], [0], [0], [1], [0, 0, 1, 1], [], []>} : vector<16x32xbf16>, vector<32x4xbf16>, vector<16x4xf32> -> vector<16x4xf32>
    %c0_15 = arith.constant 0 : index
    %c0_16 = arith.constant 0 : index
    %21 = vector.load %arg7[%c0_15, %c0_16] : memref<16x1xf32, #tpu.memory_space<vmem>>, vector<16x1xf32>
    %22 = vector.broadcast %21 : vector<16x1xf32> to vector<16x4xf32>
    %23 = arith.addf %20, %22 : vector<16x4xf32>
    %cst_17 = arith.constant 0.000000e+00 : f32
    %24 = vector.broadcast %cst_17 : f32 to vector<16x4xf32>
    %25 = arith.maximumf %23, %24 : vector<16x4xf32>
    %c0_18 = arith.constant 0 : index
    %c0_19 = arith.constant 0 : index
    %26 = vector.load %arg8[%c0_18, %c0_19] : memref<3x16xbf16, #tpu.memory_space<vmem>>, vector<3x16xbf16>
    %27 = arith.truncf %25 : vector<16x4xf32> to vector<16x4xbf16>
    %cst_20 = arith.constant dense<0.000000e+00> : vector<3x4xf32>
    %28 = tpu.matmul %26, %27, %cst_20 {dimension_numbers = #tpu.dot_dimension_numbers<[1], [0], [0], [1], [0, 0, 1, 1], [], []>} : vector<3x16xbf16>, vector<16x4xbf16>, vector<3x4xf32> -> vector<3x4xf32>
    %c0_21 = arith.constant 0 : index
    %c0_22 = arith.constant 0 : index
    %29 = vector.load %arg9[%c0_21, %c0_22] : memref<3x1xf32, #tpu.memory_space<vmem>>, vector<3x1xf32>
    %30 = vector.broadcast %29 : vector<3x1xf32> to vector<3x4xf32>
    %31 = arith.addf %28, %30 : vector<3x4xf32>
    %c0_23 = arith.constant 0 : index
    %c0_24 = arith.constant 0 : index
    %32 = vector.load %arg10[%c0_23, %c0_24] : memref<3x4xf32, #tpu.memory_space<vmem>>, vector<3x4xf32>
    tpu.vector_store %arg10[%c0_23, %c0_24], %31 {strides = array<i32>} : memref<3x4xf32, #tpu.memory_space<vmem>>, vector<3x4xf32>,
    return
  }
  func.func @transform_0(%arg0: i32) -> (i32, i32) {
    %c0_i32 = arith.constant 0 : i32
    %c0_i32_0 = arith.constant 0 : i32
    return %arg0, %c0_i32 : i32, i32
  }
  func.func @transform_1(%arg0: i32) -> (i32, i32) {
    %c0_i32 = arith.constant 0 : i32
    %c0_i32_0 = arith.constant 0 : i32
    %c0_i32_1 = arith.constant 0 : i32
    return %c0_i32, %c0_i32_0 : i32, i32
  }
  func.func @transform_2(%arg0: i32) -> (i32, i32) {
    %c0_i32 = arith.constant 0 : i32
    %c0_i32_0 = arith.constant 0 : i32
    %c0_i32_1 = arith.constant 0 : i32
    return %c0_i32, %c0_i32_0 : i32, i32
  }
  func.func @transform_3(%arg0: i32) -> (i32, i32) {
    %c0_i32 = arith.constant 0 : i32
    %c0_i32_0 = arith.constant 0 : i32
    %c0_i32_1 = arith.constant 0 : i32
    return %c0_i32, %c0_i32_0 : i32, i32
  }
  func.func @transform_4(%arg0: i32) -> (i32, i32) {
    %c0_i32 = arith.constant 0 : i32
    %c0_i32_0 = arith.constant 0 : i32
    %c0_i32_1 = arith.constant 0 : i32
    return %c0_i32, %c0_i32_0 : i32, i32
  }
  func.func @transform_5(%arg0: i32) -> (i32, i32) {
    %c0_i32 = arith.constant 0 : i32
    %c0_i32_0 = arith.constant 0 : i32
    %c0_i32_1 = arith.constant 0 : i32
    return %c0_i32, %c0_i32_0 : i32, i32
  }
  func.func @transform_6(%arg0: i32) -> (i32, i32) {
    %c0_i32 = arith.constant 0 : i32
    %c0_i32_0 = arith.constant 0 : i32
    %c0_i32_1 = arith.constant 0 : i32
    return %c0_i32, %c0_i32_0 : i32, i32
  }
  func.func @transform_7(%arg0: i32) -> (i32, i32) {
    %c0_i32 = arith.constant 0 : i32
    %c0_i32_0 = arith.constant 0 : i32
    %c0_i32_1 = arith.constant 0 : i32
    return %c0_i32, %c0_i32_0 : i32, i32
  }
  func.func @transform_8(%arg0: i32) -> (i32, i32) {
    %c0_i32 = arith.constant 0 : i32
    %c0_i32_0 = arith.constant 0 : i32
    %c0_i32_1 = arith.constant 0 : i32
    return %c0_i32, %c0_i32_0 : i32, i32
  }
  func.func @transform_9(%arg0: i32) -> (i32, i32) {
    %c0_i32 = arith.constant 0 : i32
    %c0_i32_0 = arith.constant 0 : i32
    return %c0_i32, %arg0 : i32, i32
  }
}

</mosaic_0001>

<llo_original>
// kernel: tpu_custom_call.1
$region0: #{tpu_custom_call.1}
  #allocation0 [shape = 'u32[]', space=smem, size = 0x4, offset = 0x4, fixed_abs, tag = 'smem constant byte address 0x4 - core index']
  #allocation1 [shape = 'u32[144,128]{1,0:T(1,128)}', space=vmem, size = 0x12000, scoped, tag = 'internal scratch']
  %s0 = inlined_call_operand.vmem [shape: f32[4,63], index: 0, kind: input, shape index: {}]
  %s1 = inlined_call_operand.vmem [shape: bf16[32,63], index: 1, kind: input, shape index: {}]
  %s2 = inlined_call_operand.vmem [shape: f32[32,1], index: 2, kind: input, shape index: {}]
  %s3 = inlined_call_operand.vmem [shape: bf16[32,32], index: 3, kind: input, shape index: {}]
  %s4 = inlined_call_operand.vmem [shape: f32[32,1], index: 4, kind: input, shape index: {}]
  %s5 = inlined_call_operand.vmem [shape: bf16[16,32], index: 5, kind: input, shape index: {}]
  %s6 = inlined_call_operand.vmem [shape: f32[16,1], index: 6, kind: input, shape index: {}]
  %s7 = inlined_call_operand.vmem [shape: bf16[3,16], index: 7, kind: input, shape index: {}]
  %s8 = inlined_call_operand.vmem [shape: f32[3,1], index: 8, kind: input, shape index: {}]
  %s9 = inlined_call_operand.hbm [shape: f32[3,4], index: 9, kind: output, shape index: {}]
  %s10 = sld [smem:[#allocation0]]
  $region46: #{tpu_custom_call.1} parent=0
    _
  %s12 = ssub.s32 1, %s10
  %s13 = scalar_select 0, %s12, %s10
  $region1: #{tpu_custom_call.1} parent=0
    #allocation2 [shape = 'u8[2048]{0}', space=vmem, size = 0x800, scoped, tag = 'output window, operand 0, single buffered']
    #allocation3 [shape = 's32[1]{0}', space=sflag, size = 0x4, scoped, tag = 'scoped memory for tpu_custom_call.1']
    %14 = vsyncpa [#allocation3], 0
    // Predicated region
    $region2: #{tpu_custom_call.1} parent=1 // pred_check
      _
    $region3: #{tpu_custom_call.1} parent=1 // pred_check_branch
      %16 = sbr.rel (0) target = $region5
    $region4: #{tpu_custom_call.1} parent=1 // pred_region
      _
    $region5: #{tpu_custom_call.1} parent=1 // pred_fallthru
      _
    // Predicated region
    $region6: #{tpu_custom_call.1} parent=1 // pred_check
      _
    $region7: #{tpu_custom_call.1} parent=1 // pred_check_branch
      %18 = sbr.rel (0) target = $region9
    $region8: #{tpu_custom_call.1} parent=1 // pred_region
      _
    $region9: #{tpu_custom_call.1} parent=1 // pred_fallthru
      _
    // Predicated region
    $region10: #{tpu_custom_call.1} parent=1 // pred_check
      _
    $region11: #{tpu_custom_call.1} parent=1 // pred_check_branch
      %20 = sbr.rel (0) target = $region13
    $region12: #{tpu_custom_call.1} parent=1 // pred_region
      _
    $region13: #{tpu_custom_call.1} parent=1 // pred_fallthru
      _
    // Predicated region
    $region14: #{tpu_custom_call.1} parent=1 // pred_check
      _
    $region15: #{tpu_custom_call.1} parent=1 // pred_check_branch
      %22 = sbr.rel (0) target = $region17
    $region16: #{tpu_custom_call.1} parent=1 // pred_region
      _
    $region17: #{tpu_custom_call.1} parent=1 // pred_fallthru
      _
    // Predicated region
    $region18: #{tpu_custom_call.1} parent=1 // pred_check
      _
    $region19: #{tpu_custom_call.1} parent=1 // pred_check_branch
      %24 = sbr.rel (0) target = $region21
    $region20: #{tpu_custom_call.1} parent=1 // pred_region
      _
    $region21: #{tpu_custom_call.1} parent=1 // pred_fallthru
      _
    // Predicated region
    $region22: #{tpu_custom_call.1} parent=1 // pred_check
      _
    $region23: #{tpu_custom_call.1} parent=1 // pred_check_branch
      %26 = sbr.rel (0) target = $region25
    $region24: #{tpu_custom_call.1} parent=1 // pred_region
      _
    $region25: #{tpu_custom_call.1} parent=1 // pred_fallthru
      _
    // Predicated region
    $region26: #{tpu_custom_call.1} parent=1 // pred_check
      _
    $region27: #{tpu_custom_call.1} parent=1 // pred_check_branch
      %28 = sbr.rel (0) target = $region29
    $region28: #{tpu_custom_call.1} parent=1 // pred_region
      _
    $region29: #{tpu_custom_call.1} parent=1 // pred_fallthru
      _
    // Predicated region
    $region30: #{tpu_custom_call.1} parent=1 // pred_check
      _
    $region31: #{tpu_custom_call.1} parent=1 // pred_check_branch
      %30 = sbr.rel (0) target = $region33
    $region32: #{tpu_custom_call.1} parent=1 // pred_region
      _
    $region33: #{tpu_custom_call.1} parent=1 // pred_fallthru
      _
    // Predicated region
    $region34: #{tpu_custom_call.1} parent=1 // pred_check
      _
    $region35: #{tpu_custom_call.1} parent=1 // pred_check_branch
      %32 = sbr.rel (0) target = $region37
    $region36: #{tpu_custom_call.1} parent=1 // pred_region
      _
    $region37: #{tpu_custom_call.1} parent=1 // pred_fallthru
      _
    %v34 = vld [vmem:[%s0] sm:$0xf]
    %35 = vxpose.xlu0.b32.start [1/16] %v34, 128
    %36 = vxpose.xlu0.b32.cont [2/16] 0.0, 128
    %37 = vxpose.xlu0.b32.cont [3/16] 0.0, 128
    %38 = vxpose.xlu0.b32.cont [4/16] 0.0, 128
    %39 = vxpose.xlu0.b32.cont [5/16] 0.0, 128
    %40 = vxpose.xlu0.b32.cont [6/16] 0.0, 128
    %41 = vxpose.xlu0.b32.cont [7/16] 0.0, 128
    %42 = vxpose.xlu0.b32.cont [8/16] 0.0, 128
    %43 = vxpose.xlu0.b32.cont [9/16] 0.0, 128
    %44 = vxpose.xlu0.b32.cont [10/16] 0.0, 128
    %45 = vxpose.xlu0.b32.cont [11/16] 0.0, 128
    %46 = vxpose.xlu0.b32.cont [12/16] 0.0, 128
    %47 = vxpose.xlu0.b32.cont [13/16] 0.0, 128
    %48 = vxpose.xlu0.b32.cont [14/16] 0.0, 128
    %49 = vxpose.xlu0.b32.cont [15/16] 0.0, 128
    %50 = vxpose.xlu0.b32.end [16/16] 0.0, 128
    %v51 = vpop.trf.xlu0
    %v52 = vpop.trf.xlu0
    %v53 = vpop.trf.xlu0
    %v54 = vpop.trf.xlu0
    %v55 = vpop.trf.xlu0
    %v56 = vpop.trf.xlu0
    %v57 = vpop.trf.xlu0
    %v58 = vpop.trf.xlu0
    %v59 = vpop.trf.xlu0
    %v60 = vpop.trf.xlu0
    %v61 = vpop.trf.xlu0
    %v62 = vpop.trf.xlu0
    %v63 = vpop.trf.xlu0
    %v64 = vpop.trf.xlu0
    %v65 = vpop.trf.xlu0
    %v66 = vpop.trf.xlu0
    %v67 = vpack.c.bf16 %v52, %v51
    %v68 = vpack.c.bf16 %v54, %v53
    %v69 = vpack.c.bf16 %v56, %v55
    %v70 = vpack.c.bf16 %v58, %v57
    %v71 = vld [vmem:[%s1] sm:$0xf]
    %v72 = vld [vmem:[%s1 + $0x4] sm:$0xf]
    %v73 = vld [vmem:[%s1 + $0x8] sm:$0xf]
    %v74 = vld [vmem:[%s1 + $0xc] sm:$0xf]
    %v75 = vld [vmem:[%s2] sm:$0xff]
    %v76 = vld [vmem:[%s2 + $0x8] sm:$0xff]
    %v77 = vld [vmem:[%s2 + $0x10] sm:$0xff]
    %v78 = vld [vmem:[%s2 + $0x18] sm:$0xff]
    %80 = vset.pattern.permute.xlu0 0
    %81 = vperm.xlu0 %80, %v75
    %v82 = vpop.permute.xlu0 %81
    %85 = vset.pattern.permute.xlu0 0
    %86 = vperm.xlu0 %85, %v76
    %v87 = vpop.permute.xlu0 %86
    %90 = vset.pattern.permute.xlu0 0
    %91 = vperm.xlu0 %90, %v77
    %v92 = vpop.permute.xlu0 %91
    %95 = vset.pattern.permute.xlu0 0
    %96 = vperm.xlu0 %95, %v78
    %v97 = vpop.permute.xlu0 %96
    %v103 = vunpack.c.l.b16 %v71
    %v104 = vunpack.c.l.b16 %v72
    %v105 = vunpack.c.l.b16 %v73
    %v106 = vunpack.c.l.b16 %v74
    %v107 = vpack.c.b16 %v104, %v103
    %v108 = vpack.c.b16 %v106, %v105
    %vm109 = vcmask 515072
    %v111 = vsel %vm109, %v107, 0
    %v114 = vsel %vm109, %v108, 0
    %vm116 = vcmask 1046528
    %vm117 = vcmask 1047552
    %v118 = vsel %vm116, 4294967295, 65535
    %v119 = vsel %vm117, %v118, 0
    %v121 = vand.u32 %v70, %v119
    %123 = vmatprep.subr.bf16.mxu0 0
    %124 = vmatpush1.bf16.msra.mxu0 %v67
    %125 = vmatprep.subr.bf16.mxu0 0
    %126 = vmatpush1.bf16.msra.mxu0 %v68
    %127 = vmatprep.subr.bf16.mxu0 0
    %128 = vmatpush1.bf16.msra.mxu0 %v69
    %129 = vmatprep.subr.bf16.mxu0 0
    %130 = vmatpush1.bf16.msra.mxu0 %v121
    %131 = vmatprep.subr.bf16.mxu0 0
    %132 = vmatpush1.bf16.msra.mxu0 0
    %133 = vmatprep.subr.bf16.mxu0 0
    %134 = vmatpush1.bf16.msra.mxu0 0
    %135 = vmatprep.subr.bf16.mxu0 0
    %136 = vmatpush1.bf16.msra.mxu0 0
    %137 = vmatprep.subr.bf16.mxu0 0
    %138 = vmatpush1.bf16.msra.mxu0 0
    %139 = vmatprep.subr.bf16.mxu0 0
    %140 = vmatpush1.bf16.msra.mxu0 0
    %141 = vmatprep.subr.bf16.mxu0 0
    %142 = vmatpush1.bf16.msra.mxu0 0
    %143 = vmatprep.subr.bf16.mxu0 0
    %144 = vmatpush1.bf16.msra.mxu0 0
    %145 = vmatprep.subr.bf16.mxu0 0
    %146 = vmatpush1.bf16.msra.mxu0 0
    %147 = vmatprep.subr.bf16.mxu0 0
    %148 = vmatpush1.bf16.msra.mxu0 0
    %149 = vmatprep.subr.bf16.mxu0 0
    %150 = vmatpush1.bf16.msra.mxu0 0
    %151 = vmatprep.subr.bf16.mxu0 0
    %152 = vmatpush1.bf16.msra.mxu0 0
    %153 = vmatprep.subr.bf16.mxu0 0
    %154 = vmatpush1.bf16.msra.mxu0 0
    %155 = vmatprep.mubr.bf16.mxu0 0
    %156 = vmatmul.mubr.bf16.gmra.mrb[0].mxu0 %v111
    %v157 = vpop.f32.mrb[0].mxu0
    %v158 = vadd.f32 %v82, %v157
    %v159 = vpop.f32.mrb[0].mxu0
    %v160 = vpop.f32.mrb[0].mxu0
    %v161 = vadd.f32 %v87, %v160
    %v162 = vpop.f32.mrb[0].mxu0
    %163 = vmatprep.mubr.bf16.mxu0 0
    %164 = vmatmul.mubr.bf16.gmra.mrb[0].mxu0 %v114
    %v165 = vpop.f32.mrb[0].mxu0
    %v166 = vadd.f32 %v92, %v165
    %v167 = vpop.f32.mrb[0].mxu0
    %v168 = vpop.f32.mrb[0].mxu0
    %v169 = vadd.f32 %v97, %v168
    %v170 = vpop.f32.mrb[0].mxu0
    %171 = vdwg.mxu0
    %v172 = vmax.f32 %v158, 0.0
    %v173 = vmax.f32 %v161, 0.0
    %v174 = vmax.f32 %v166, 0.0
    %v175 = vmax.f32 %v169, 0.0
    %v176 = vld [vmem:[%s3] sm:$0xf]
    %v177 = vld [vmem:[%s3 + $0x4] sm:$0xf]
    %v178 = vld [vmem:[%s3 + $0x8] sm:$0xf]
    %v179 = vld [vmem:[%s3 + $0xc] sm:$0xf]
    %v180 = vpack.c.bf16 %v173, %v172
    %v181 = vpack.c.bf16 %v175, %v174
    %v182 = vld [vmem:[%s4] sm:$0xff]
    %v183 = vld [vmem:[%s4 + $0x8] sm:$0xff]
    %v184 = vld [vmem:[%s4 + $0x10] sm:$0xff]
    %v185 = vld [vmem:[%s4 + $0x18] sm:$0xff]
    %187 = vset.pattern.permute.xlu0 0
    %188 = vperm.xlu0 %187, %v182
    %v189 = vpop.permute.xlu0 %188
    %192 = vset.pattern.permute.xlu0 0
    %193 = vperm.xlu0 %192, %v183
    %v194 = vpop.permute.xlu0 %193
    %197 = vset.pattern.permute.xlu0 0
    %198 = vperm.xlu0 %197, %v184
    %v199 = vpop.permute.xlu0 %198
    %202 = vset.pattern.permute.xlu0 0
    %203 = vperm.xlu0 %202, %v185
    %v204 = vpop.permute.xlu0 %203
    %v210 = vunpack.c.l.b16 %v176
    %v211 = vunpack.c.l.b16 %v177
    %v212 = vunpack.c.l.b16 %v178
    %v213 = vunpack.c.l.b16 %v179
    %v214 = vpack.c.b16 %v211, %v210
    %v215 = vpack.c.b16 %v213, %v212
    %vm216 = vcmask 261120
    %v218 = vsel %vm216, %v214, 0
    %v221 = vsel %vm216, %v215, 0
    %223 = vmatprep.subr.bf16.mxu0 0
    %224 = vmatpush1.bf16.msra.mxu0 %v180
    %225 = vmatprep.subr.bf16.mxu0 0
    %226 = vmatpush1.bf16.msra.mxu0 %v181
    %227 = vmatprep.subr.bf16.mxu0 0
    %228 = vmatpush1.bf16.msra.mxu0 0
    %229 = vmatprep.subr.bf16.mxu0 0
    %230 = vmatpush1.bf16.msra.mxu0 0
    %231 = vmatprep.subr.bf16.mxu0 0
    %232 = vmatpush1.bf16.msra.mxu0 0
    %233 = vmatprep.subr.bf16.mxu0 0
    %234 = vmatpush1.bf16.msra.mxu0 0
    %235 = vmatprep.subr.bf16.mxu0 0
    %236 = vmatpush1.bf16.msra.mxu0 0
    %237 = vmatprep.subr.bf16.mxu0 0
    %238 = vmatpush1.bf16.msra.mxu0 0
    %239 = vmatprep.subr.bf16.mxu0 0
    %240 = vmatpush1.bf16.msra.mxu0 0
    %241 = vmatprep.subr.bf16.mxu0 0
    %242 = vmatpush1.bf16.msra.mxu0 0
    %243 = vmatprep.subr.bf16.mxu0 0
    %244 = vmatpush1.bf16.msra.mxu0 0
    %245 = vmatprep.subr.bf16.mxu0 0
    %246 = vmatpush1.bf16.msra.mxu0 0
    %247 = vmatprep.subr.bf16.mxu0 0
    %248 = vmatpush1.bf16.msra.mxu0 0
    %249 = vmatprep.subr.bf16.mxu0 0
    %250 = vmatpush1.bf16.msra.mxu0 0
    %251 = vmatprep.subr.bf16.mxu0 0
    %252 = vmatpush1.bf16.msra.mxu0 0
    %253 = vmatprep.subr.bf16.mxu0 0
    %254 = vmatpush1.bf16.msra.mxu0 0
    %255 = vmatprep.mubr.bf16.mxu0 0
    %256 = vmatmul.mubr.bf16.gmra.mrb[0].mxu0 %v218
    %v257 = vpop.f32.mrb[0].mxu0
    %v258 = vadd.f32 %v189, %v257
    %v259 = vpop.f32.mrb[0].mxu0
    %v260 = vpop.f32.mrb[0].mxu0
    %v261 = vadd.f32 %v194, %v260
    %v262 = vpop.f32.mrb[0].mxu0
    %263 = vmatprep.mubr.bf16.mxu0 0
    %264 = vmatmul.mubr.bf16.gmra.mrb[0].mxu0 %v221
    %v265 = vpop.f32.mrb[0].mxu0
    %v266 = vadd.f32 %v199, %v265
    %v267 = vpop.f32.mrb[0].mxu0
    %v268 = vpop.f32.mrb[0].mxu0
    %v269 = vadd.f32 %v204, %v268
    %v270 = vpop.f32.mrb[0].mxu0
    %271 = vdwg.mxu0
    %v272 = vmax.f32 %v258, 0.0
    %v273 = vmax.f32 %v261, 0.0
    %v274 = vmax.f32 %v266, 0.0
    %v275 = vmax.f32 %v269, 0.0
    %v276 = vld [vmem:[%s5] sm:$0xf]
    %v277 = vld [vmem:[%s5 + $0x4] sm:$0xf]
    %v278 = vpack.c.bf16 %v273, %v272
    %v279 = vpack.c.bf16 %v275, %v274
    %v280 = vld [vmem:[%s6] sm:$0xff]
    %v281 = vld [vmem:[%s6 + $0x8] sm:$0xff]
    %283 = vset.pattern.permute.xlu0 0
    %284 = vperm.xlu0 %283, %v280
    %v285 = vpop.permute.xlu0 %284
    %288 = vset.pattern.permute.xlu0 0
    %289 = vperm.xlu0 %288, %v281
    %v290 = vpop.permute.xlu0 %289
    %v294 = vunpack.c.l.b16 %v276
    %v295 = vunpack.c.l.b16 %v277
    %v296 = vpack.c.b16 %v295, %v294
    %v298 = vsel %vm216, %v296, 0
    %300 = vmatprep.subr.bf16.mxu0 0
    %301 = vmatpush1.bf16.msra.mxu0 %v278
    %302 = vmatprep.subr.bf16.mxu0 0
    %303 = vmatpush1.bf16.msra.mxu0 %v279
    %304 = vmatprep.subr.bf16.mxu0 0
    %305 = vmatpush1.bf16.msra.mxu0 0
    %306 = vmatprep.subr.bf16.mxu0 0
    %307 = vmatpush1.bf16.msra.mxu0 0
    %308 = vmatprep.subr.bf16.mxu0 0
    %309 = vmatpush1.bf16.msra.mxu0 0
    %310 = vmatprep.subr.bf16.mxu0 0
    %311 = vmatpush1.bf16.msra.mxu0 0
    %312 = vmatprep.subr.bf16.mxu0 0
    %313 = vmatpush1.bf16.msra.mxu0 0
    %314 = vmatprep.subr.bf16.mxu0 0
    %315 = vmatpush1.bf16.msra.mxu0 0
    %316 = vmatprep.subr.bf16.mxu0 0
    %317 = vmatpush1.bf16.msra.mxu0 0
    %318 = vmatprep.subr.bf16.mxu0 0
    %319 = vmatpush1.bf16.msra.mxu0 0
    %320 = vmatprep.subr.bf16.mxu0 0
    %321 = vmatpush1.bf16.msra.mxu0 0
    %322 = vmatprep.subr.bf16.mxu0 0
    %323 = vmatpush1.bf16.msra.mxu0 0
    %324 = vmatprep.subr.bf16.mxu0 0
    %325 = vmatpush1.bf16.msra.mxu0 0
    %326 = vmatprep.subr.bf16.mxu0 0
    %327 = vmatpush1.bf16.msra.mxu0 0
    %328 = vmatprep.subr.bf16.mxu0 0
    %329 = vmatpush1.bf16.msra.mxu0 0
    %330 = vmatprep.subr.bf16.mxu0 0
    %331 = vmatpush1.bf16.msra.mxu0 0
    %332 = vmatprep.mubr.bf16.mxu0 0
    %333 = vmatmul.mubr.bf16.gmra.mrb[0].mxu0 %v298
    %v334 = vpop.f32.mrb[0].mxu0
    %v335 = vadd.f32 %v285, %v334
    %v336 = vpop.f32.mrb[0].mxu0
    %v337 = vpop.f32.mrb[0].mxu0
    %v338 = vadd.f32 %v290, %v337
    %v339 = vpop.f32.mrb[0].mxu0
    %340 = vdwg.mxu0
    %v341 = vmax.f32 %v335, 0.0
    %v342 = vmax.f32 %v338, 0.0
    %v343 = vld [vmem:[%s7] sm:$0x3]
    %v344 = vpack.c.bf16 %v342, %v341
    %v345 = vld [vmem:[%s8] sm:$0x7]
    %347 = vset.pattern.permute.xlu0 0
    %348 = vperm.xlu0 %347, %v345
    %v349 = vpop.permute.xlu0 %348
    %vm351 = vcmask 130048
    %v353 = vsel %vm351, %v343, 0
    %355 = vmatprep.subr.bf16.mxu0 0
    %356 = vmatpush1.bf16.msra.mxu0 %v344
    %357 = vmatprep.subr.bf16.mxu0 0
    %358 = vmatpush1.bf16.msra.mxu0 0
    %359 = vmatprep.subr.bf16.mxu0 0
    %360 = vmatpush1.bf16.msra.mxu0 0
    %361 = vmatprep.subr.bf16.mxu0 0
    %362 = vmatpush1.bf16.msra.mxu0 0
    %363 = vmatprep.subr.bf16.mxu0 0
    %364 = vmatpush1.bf16.msra.mxu0 0
    %365 = vmatprep.subr.bf16.mxu0 0
    %366 = vmatpush1.bf16.msra.mxu0 0
    %367 = vmatprep.subr.bf16.mxu0 0
    %368 = vmatpush1.bf16.msra.mxu0 0
    %369 = vmatprep.subr.bf16.mxu0 0
    %370 = vmatpush1.bf16.msra.mxu0 0
    %371 = vmatprep.subr.bf16.mxu0 0
    %372 = vmatpush1.bf16.msra.mxu0 0
    %373 = vmatprep.subr.bf16.mxu0 0
    %374 = vmatpush1.bf16.msra.mxu0 0
    %375 = vmatprep.subr.bf16.mxu0 0
    %376 = vmatpush1.bf16.msra.mxu0 0
    %377 = vmatprep.subr.bf16.mxu0 0
    %378 = vmatpush1.bf16.msra.mxu0 0
    %379 = vmatprep.subr.bf16.mxu0 0
    %380 = vmatpush1.bf16.msra.mxu0 0
    %381 = vmatprep.subr.bf16.mxu0 0
    %382 = vmatpush1.bf16.msra.mxu0 0
    %383 = vmatprep.subr.bf16.mxu0 0
    %384 = vmatpush1.bf16.msra.mxu0 0
    %385 = vmatprep.subr.bf16.mxu0 0
    %386 = vmatpush1.bf16.msra.mxu0 0
    %387 = vmatprep.mubr.bf16.mxu0 0
    %388 = vmatmul.mubr.bf16.gmra.mrb[0].mxu0 %v353
    %v389 = vpop.f32.mrb[0].mxu0
    %v390 = vadd.f32 %v349, %v389
    %v391 = vpop.f32.mrb[0].mxu0
    %v392 = vpop.f32.mrb[0].mxu0
    %v393 = vpop.f32.mrb[0].mxu0
    %394 = vdwg.mxu0
    %vm395 = vcmask 26624
    %396 = vst.msk [vmem:[#allocation2] sm:$0x7] %vm395, %v390
    // Predicated region
    $region38: #{tpu_custom_call.1} parent=1 // pred_check
      _
    $region39: #{tpu_custom_call.1} parent=1 // pred_check_branch
      %398 = sbr.rel (0) target = $region41
    $region40: #{tpu_custom_call.1} parent=1 // pred_region
      %s400 = ssub.s32 64, 64
      %401 = vsyncadd [#allocation3], %s400
      %s403 = sshll.u32 [#allocation2], 4
      %s404 = int_to_ptr.vmem [resolvable:$true] %s403
      %406 = dma.vmem_to_hbm [thread:$0]  %s404, 64, %s9, [#allocation3]
    $region41: #{tpu_custom_call.1} parent=1 // pred_fallthru
      _
    // Predicated region
    $region42: #{tpu_custom_call.1} parent=1 // pred_check
      _
    $region43: #{tpu_custom_call.1} parent=1 // pred_check_branch
      %408 = sbr.rel (0) target = $region45
    $region44: #{tpu_custom_call.1} parent=1 // pred_region
      %409 = dma.done [#allocation3], 64
    $region45: #{tpu_custom_call.1} parent=1 // pred_fallthru
      _
    %410 = vsyncpa [#allocation3], 1

</llo_original>
